<compile_context>
chip_gen: v6e
topology: v6e:2x2x1
jax: 0.10.0
libtpu: 0.0.40
codegen_flags: <defaults>
</compile_context>

<pallas_src>
import functools

import jax
import jax.numpy as jnp
from jax.experimental import pallas as pl
from jax.experimental.pallas import tpu as pltpu


def _round_up(n, m):
    return ((n + m - 1) // m) * m


def _bf16_eup_supported():
    """bf16 VPU/EUP exists on v6e/v7x; keep f32 tanh on v5-era and older."""
    try:
        kind = jax.devices()[0].device_kind.lower()
    except Exception:
        return True
    return not any(tag in kind for tag in ("v2", "v3", "v4", "v5"))


def _vmem_ceiling_bytes():
    """~75% of per-core VMEM (≈48 MiB on v7x, ≈96 MiB on v5e/v6e)."""
    try:
        cap = pltpu.get_tpu_info().vmem_capacity_bytes
    except Exception:
        cap = 64 * 1024 * 1024  # conservative: v7x per-TC physical VMEM
    return int(cap * 3 // 4)


def ae_encoder_kernel(x_ref, w1_ref, b1_ref, w2_ref, b2_ref, o_ref, *, bf16_tanh):
    # In-kernel f32 -> bf16 cast of the activation tile (VPU; hidden under DMA/MXU).
    x = x_ref[...].astype(jnp.bfloat16)
    # Layer 1: bf16 MXU matmul, f32 accumulation + f32 bias add.
    a1 = jnp.dot(x, w1_ref[...], preferred_element_type=jnp.float32) + b1_ref[...]
    if bf16_tanh:
        # v6e/v7x: bf16 EUP tanh halves transcendental work + vreg pressure.
        h = jnp.tanh(a1.astype(jnp.bfloat16))
    else:
        # v5e and older: no bf16 EUP -- tanh in f32, then cast for the second matmul.
        h = jnp.tanh(a1).astype(jnp.bfloat16)
    # Layer 2: bf16 MXU matmul, f32 accumulation, f32 bias + tanh, f32 output.
    a2 = jnp.dot(h, w2_ref[...], preferred_element_type=jnp.float32) + b2_ref[...]
    o_ref[...] = jnp.tanh(a2).astype(o_ref.dtype)


def _ae_encoder_call(x, w1, b1, w2, b2, *, tile_b, single_buffer_weights, bf16_tanh):
    """One forward pass. w1/w2 already bf16, b1/b2 already f32 row vectors."""
    B, D = x.shape
    H = w1.shape[1]
    F = w2.shape[1]
    SUB = 8

    # Batch tile: large (amortizes the ~0.35us per-grid-step overhead), multiple of 8.
    tb = min(_round_up(tile_b, SUB), _round_up(B, SUB))
    # Mid-sized batches: keep >=2 grid steps so both v7x TensorCores get work.
    if B >= 128 and pl.cdiv(B, tb) < 2:
        tb = _round_up(pl.cdiv(B, 2), SUB)
    grid = (pl.cdiv(B, tb),)  # ragged last tile is masked by Pallas

    weight_kw = {}
    if single_buffer_weights:
        # Grid-invariant operands: one resident VMEM buffer instead of the default 2.
        weight_kw = dict(pipeline_mode=pl.Buffered(1))

    # VMEM budget: double-buffered x/out tiles + resident weights + hidden
    # intermediates; 1.5x safety factor + internal-scratch margin, capped at
    # ~75% of physical VMEM (device-aware: v7x vs v5e/v6e).
    wmult = 1 if single_buffer_weights else 2
    resident = (
        2 * tb * D * 4                                   # x tiles (f32, double-buffered)
        + 2 * tb * F * 4                                 # out tiles (f32, double-buffered)
        + wmult * ((D * H + H * F) * 2 + (H + F) * 4)    # weights (bf16) + biases (f32)
        + tb * H * 4 + tb * H * 2 + tb * D * 2           # f32/bf16 hidden + bf16 x tile
    )
    vmem_limit = max(
        32 * 1024 * 1024,
        min(int(1.5 * resident) + 8 * 1024 * 1024, _vmem_ceiling_bytes()),
    )

    kernel = functools.partial(ae_encoder_kernel, bf16_tanh=bf16_tanh)
    return pl.pallas_call(
        kernel,
        out_shape=jax.ShapeDtypeStruct((B, F), jnp.float32),
        grid_spec=pl.GridSpec(
            grid=grid,
            in_specs=[
                pl.BlockSpec((tb, D), lambda i: (i, 0)),              # x batch tile
                pl.BlockSpec((D, H), lambda i: (0, 0), **weight_kw),  # W1 (resident)
                pl.BlockSpec((1, H), lambda i: (0, 0), **weight_kw),  # b1
                pl.BlockSpec((H, F), lambda i: (0, 0), **weight_kw),  # W2 (resident)
                pl.BlockSpec((1, F), lambda i: (0, 0), **weight_kw),  # b2
            ],
            out_specs=pl.BlockSpec((tb, F), lambda i: (i, 0)),
        ),
        compiler_params=pltpu.CompilerParams(
            dimension_semantics=("parallel",),
            vmem_limit_bytes=vmem_limit,
        ),
        cost_estimate=pl.CostEstimate(
            flops=2 * B * (D * H + H * F),
            transcendentals=B * (H + F),
            bytes_accessed=(B * D * 4 + (D * H + H * F) * 2 + (H + F) * 4 + B * F * 4),
        ),
    )(x, w1, b1, w2, b2)


_ae_encoder_jit = jax.jit(
    _ae_encoder_call,
    static_argnames=("tile_b", "single_buffer_weights", "bf16_tanh"),
)


def make_ae_encoder(w1, b1, w2, b2, *, tile_b=512, single_buffer_weights=True):
    """One-time weight prep (bf16 cast, bias shaping); returns apply(x)."""
    w1b = jnp.asarray(w1, jnp.bfloat16)
    w2b = jnp.asarray(w2, jnp.bfloat16)
    b1f = jnp.asarray(b1, jnp.float32).reshape(1, -1)
    b2f = jnp.asarray(b2, jnp.float32).reshape(1, -1)
    bf16_tanh = _bf16_eup_supported()

    def apply(x):
        return _ae_encoder_jit(
            x, w1b, b1f, w2b, b2f,
            tile_b=tile_b,
            single_buffer_weights=single_buffer_weights,
            bf16_tanh=bf16_tanh,
        )

    return apply


def _reference(x, w1, b1, w2, b2, bf16_tanh):
    """Pure-JAX reference with the same bf16-MXU / f32-accumulation recipe."""
    xb = x.astype(jnp.bfloat16)
    w1b = w1.astype(jnp.bfloat16)
    w2b = w2.astype(jnp.bfloat16)
    a1 = jnp.dot(xb, w1b, preferred_element_type=jnp.float32) + b1
    h = jnp.tanh(a1.astype(jnp.bfloat16)) if bf16_tanh else jnp.tanh(a1).astype(jnp.bfloat16)
    return jnp.tanh(jnp.dot(h, w2b, preferred_element_type=jnp.float32) + b2)


def init_linear(key, fan_in, fan_out):
    """Deterministic PyTorch-style nn.Linear init: uniform(-1/sqrt(fan_in), +)."""
    kw, kb = jax.random.split(key)
    bound = 1.0 / jnp.sqrt(fan_in)
    w = jax.random.uniform(kw, (fan_in, fan_out), jnp.float32, -bound, bound)
    b = jax.random.uniform(kb, (1, fan_out), jnp.float32, -bound, bound)
    return w, b


if __name__ == "__main__":
    # Small shapes consistent with AE(input_size, hidden_size=512, feature_dim=50)
    batch = 16
    input_size = 64
    hidden_size = 512   # module default
    feature_dim = 50    # module default

    root = jax.random.PRNGKey(0)
    kx, k1, k2 = jax.random.split(root, 3)

    x = jax.random.normal(kx, (batch, input_size), jnp.float32)
    w1, b1 = init_linear(k1, input_size, hidden_size)   # encoder Linear 1
    w2, b2 = init_linear(k2, hidden_size, feature_dim)  # encoder Linear 2

    try:
        ae_apply = make_ae_encoder(w1, b1, w2, b2, single_buffer_weights=True)
        encoded = jax.block_until_ready(ae_apply(x))
    except Exception:
        # This JAX build rejected pl.Buffered(1); fall back to default buffering.
        ae_apply = make_ae_encoder(w1, b1, w2, b2, single_buffer_weights=False)
        encoded = jax.block_until_ready(ae_apply(x))

    assert encoded.shape == (batch, feature_dim)
    assert encoded.dtype == jnp.float32

    bf16_tanh = _bf16_eup_supported()
    ref_recipe = _reference(x, w1, b1, w2, b2, bf16_tanh)
    assert jnp.allclose(encoded, ref_recipe, atol=2e-2, rtol=2e-2)

    # Full-f32 forward (loose tolerance covers the deliberate bf16 cast).
    ref_f32 = jnp.tanh(jnp.tanh(x @ w1 + b1) @ w2 + b2)
    assert jnp.allclose(encoded, ref_f32, atol=5e-2, rtol=5e-2)

    # Ragged batch (13 rows, not a multiple of 8): handled by Pallas masking of
    # the partial last tile -- no wrapper padding or slicing.
    enc13 = jax.block_until_ready(ae_apply(x[:13]))
    assert enc13.shape == (13, feature_dim)
    assert jnp.allclose(enc13, ref_recipe[:13], atol=2e-2, rtol=2e-2)

    # Mid-sized batch exercises the 2-step grid split (v7x megacore path).
    x_big = jax.random.normal(jax.random.PRNGKey(1), (200, input_size), jnp.float32)
    enc_big = jax.block_until_ready(ae_apply(x_big))
    assert enc_big.shape == (200, feature_dim)
    ref_big = _reference(x_big, w1, b1, w2, b2, bf16_tanh)
    assert jnp.allclose(enc_big, ref_big, atol=2e-2, rtol=2e-2)

    # TODO(synk): AE.reconstruct (decoder) is the same kernel with swapped dims,
    # and the Adam optimizers are training state -- neither is part of forward().
    print("KERNEL_OK")
</pallas_src>

<mosaic_0001>
module attributes {stable_mosaic.version = 11 : i64} {
  func.func @ae_encoder_kernel(%arg0: i32, %arg1: memref<16x64xf32, #tpu.memory_space<vmem>>, %arg2: memref<64x512xbf16, #tpu.memory_space<vmem>>, %arg3: memref<1x512xf32, #tpu.memory_space<vmem>>, %arg4: memref<512x50xbf16, #tpu.memory_space<vmem>>, %arg5: memref<1x50xf32, #tpu.memory_space<vmem>>, %arg6: memref<16x50xf32, #tpu.memory_space<vmem>>) attributes {dimension_semantics = [#tpu.dimension_semantics<parallel>], iteration_bounds = array<i64: 1>, scalar_prefetch = 0 : i64, scratch_operands = 0 : i64, tpu.core_type = #tpu.core_type<tc>, window_params = [{transform_indices = @transform_0, window_bounds = array<i64: 16, 64>}, {pipeline_mode = #tpu.pipeline_mode<synchronous>, transform_indices = @transform_1, window_bounds = array<i64: 64, 512>}, {pipeline_mode = #tpu.pipeline_mode<synchronous>, transform_indices = @transform_2, window_bounds = array<i64: 1, 512>}, {pipeline_mode = #tpu.pipeline_mode<synchronous>, transform_indices = @transform_3, window_bounds = array<i64: 512, 50>}, {pipeline_mode = #tpu.pipeline_mode<synchronous>, transform_indices = @transform_4, window_bounds = array<i64: 1, 50>}, {transform_indices = @transform_5, window_bounds = array<i64: 16, 50>}]} {
    %c0 = arith.constant 0 : index
    %c0_0 = arith.constant 0 : index
    %0 = vector.load %arg1[%c0, %c0_0] : memref<16x64xf32, #tpu.memory_space<vmem>>, vector<16x64xf32>
    %1 = arith.truncf %0 : vector<16x64xf32> to vector<16x64xbf16>
    %c0_1 = arith.constant 0 : index
    %c0_2 = arith.constant 0 : index
    %2 = vector.load %arg2[%c0_1, %c0_2] : memref<64x512xbf16, #tpu.memory_space<vmem>>, vector<64x512xbf16>
    %cst = arith.constant dense<0.000000e+00> : vector<16x512xf32>
    %3 = tpu.matmul %1, %2, %cst {dimension_numbers = #tpu.dot_dimension_numbers<[1], [0], [0], [1], [0, 0, 1, 1], [], []>} : vector<16x64xbf16>, vector<64x512xbf16>, vector<16x512xf32> -> vector<16x512xf32>
    %c0_3 = arith.constant 0 : index
    %c0_4 = arith.constant 0 : index
    %4 = vector.load %arg3[%c0_3, %c0_4] : memref<1x512xf32, #tpu.memory_space<vmem>>, vector<1x512xf32>
    %5 = vector.broadcast %4 : vector<1x512xf32> to vector<16x512xf32>
    %6 = arith.addf %3, %5 : vector<16x512xf32>
    %7 = arith.truncf %6 : vector<16x512xf32> to vector<16x512xbf16>
    %8 = math.tanh %7 : vector<16x512xbf16>
    %c0_5 = arith.constant 0 : index
    %c0_6 = arith.constant 0 : index
    %9 = vector.load %arg4[%c0_5, %c0_6] : memref<512x50xbf16, #tpu.memory_space<vmem>>, vector<512x50xbf16>
    %cst_7 = arith.constant dense<0.000000e+00> : vector<16x50xf32>
    %10 = tpu.matmul %8, %9, %cst_7 {dimension_numbers = #tpu.dot_dimension_numbers<[1], [0], [0], [1], [0, 0, 1, 1], [], []>} : vector<16x512xbf16>, vector<512x50xbf16>, vector<16x50xf32> -> vector<16x50xf32>
    %c0_8 = arith.constant 0 : index
    %c0_9 = arith.constant 0 : index
    %11 = vector.load %arg5[%c0_8, %c0_9] : memref<1x50xf32, #tpu.memory_space<vmem>>, vector<1x50xf32>
    %12 = vector.broadcast %11 : vector<1x50xf32> to vector<16x50xf32>
    %13 = arith.addf %10, %12 : vector<16x50xf32>
    %14 = math.tanh %13 : vector<16x50xf32>
    %c0_10 = arith.constant 0 : index
    %c0_11 = arith.constant 0 : index
    %15 = vector.load %arg6[%c0_10, %c0_11] : memref<16x50xf32, #tpu.memory_space<vmem>>, vector<16x50xf32>
    tpu.vector_store %arg6[%c0_10, %c0_11], %14 {strides = array<i32>} : memref<16x50xf32, #tpu.memory_space<vmem>>, vector<16x50xf32>,
    return
  }
  func.func @transform_0(%arg0: i32) -> (i32, i32) {
    %c0_i32 = arith.constant 0 : i32
    %c0_i32_0 = arith.constant 0 : i32
    return %arg0, %c0_i32 : i32, i32
  }
  func.func @transform_1(%arg0: i32) -> (i32, i32) {
    %c0_i32 = arith.constant 0 : i32
    %c0_i32_0 = arith.constant 0 : i32
    %c0_i32_1 = arith.constant 0 : i32
    return %c0_i32, %c0_i32_0 : i32, i32
  }
  func.func @transform_2(%arg0: i32) -> (i32, i32) {
    %c0_i32 = arith.constant 0 : i32
    %c0_i32_0 = arith.constant 0 : i32
    %c0_i32_1 = arith.constant 0 : i32
    return %c0_i32, %c0_i32_0 : i32, i32
  }
  func.func @transform_3(%arg0: i32) -> (i32, i32) {
    %c0_i32 = arith.constant 0 : i32
    %c0_i32_0 = arith.constant 0 : i32
    %c0_i32_1 = arith.constant 0 : i32
    return %c0_i32, %c0_i32_0 : i32, i32
  }
  func.func @transform_4(%arg0: i32) -> (i32, i32) {
    %c0_i32 = arith.constant 0 : i32
    %c0_i32_0 = arith.constant 0 : i32
    %c0_i32_1 = arith.constant 0 : i32
    return %c0_i32, %c0_i32_0 : i32, i32
  }
  func.func @transform_5(%arg0: i32) -> (i32, i32) {
    %c0_i32 = arith.constant 0 : i32
    %c0_i32_0 = arith.constant 0 : i32
    return %arg0, %c0_i32 : i32, i32
  }
}

module attributes {stable_mosaic.version = 11 : i64} {
  func.func @ae_encoder_kernel(%arg0: i32, %arg1: memref<16x64xf32, #tpu.memory_space<vmem>>, %arg2: memref<64x512xbf16, #tpu.memory_space<vmem>>, %arg3: memref<1x512xf32, #tpu.memory_space<vmem>>, %arg4: memref<512x50xbf16, #tpu.memory_space<vmem>>, %arg5: memref<1x50xf32, #tpu.memory_space<vmem>>, %arg6: memref<16x50xf32, #tpu.memory_space<vmem>>) attributes {dimension_semantics = [#tpu.dimension_semantics<parallel>], iteration_bounds = array<i64: 1>, scalar_prefetch = 0 : i64, scratch_operands = 0 : i64, tpu.core_type = #tpu.core_type<tc>, window_params = [{transform_indices = @transform_0, window_bounds = array<i64: 16, 64>}, {pipeline_mode = #tpu.pipeline_mode<synchronous>, transform_indices = @transform_1, window_bounds = array<i64: 64, 512>}, {pipeline_mode = #tpu.pipeline_mode<synchronous>, transform_indices = @transform_2, window_bounds = array<i64: 1, 512>}, {pipeline_mode = #tpu.pipeline_mode<synchronous>, transform_indices = @transform_3, window_bounds = array<i64: 512, 50>}, {pipeline_mode = #tpu.pipeline_mode<synchronous>, transform_indices = @transform_4, window_bounds = array<i64: 1, 50>}, {transform_indices = @transform_5, window_bounds = array<i64: 16, 50>}]} {
    %c0 = arith.constant 0 : index
    %c0_0 = arith.constant 0 : index
    %0 = vector.load %arg1[%c0, %c0_0] : memref<16x64xf32, #tpu.memory_space<vmem>>, vector<16x64xf32>
    %1 = arith.truncf %0 : vector<16x64xf32> to vector<16x64xbf16>
    %c0_1 = arith.constant 0 : index
    %c0_2 = arith.constant 0 : index
    %2 = vector.load %arg2[%c0_1, %c0_2] : memref<64x512xbf16, #tpu.memory_space<vmem>>, vector<64x512xbf16>
    %cst = arith.constant dense<0.000000e+00> : vector<16x512xf32>
    %3 = tpu.matmul %1, %2, %cst {dimension_numbers = #tpu.dot_dimension_numbers<[1], [0], [0], [1], [0, 0, 1, 1], [], []>} : vector<16x64xbf16>, vector<64x512xbf16>, vector<16x512xf32> -> vector<16x512xf32>
    %c0_3 = arith.constant 0 : index
    %c0_4 = arith.constant 0 : index
    %4 = vector.load %arg3[%c0_3, %c0_4] : memref<1x512xf32, #tpu.memory_space<vmem>>, vector<1x512xf32>
    %5 = vector.broadcast %4 : vector<1x512xf32> to vector<16x512xf32>
    %6 = arith.addf %3, %5 : vector<16x512xf32>
    %7 = arith.truncf %6 : vector<16x512xf32> to vector<16x512xbf16>
    %8 = math.tanh %7 : vector<16x512xbf16>
    %c0_5 = arith.constant 0 : index
    %c0_6 = arith.constant 0 : index
    %9 = vector.load %arg4[%c0_5, %c0_6] : memref<512x50xbf16, #tpu.memory_space<vmem>>, vector<512x50xbf16>
    %cst_7 = arith.constant dense<0.000000e+00> : vector<16x50xf32>
    %10 = tpu.matmul %8, %9, %cst_7 {dimension_numbers = #tpu.dot_dimension_numbers<[1], [0], [0], [1], [0, 0, 1, 1], [], []>} : vector<16x512xbf16>, vector<512x50xbf16>, vector<16x50xf32> -> vector<16x50xf32>
    %c0_8 = arith.constant 0 : index
    %c0_9 = arith.constant 0 : index
    %11 = vector.load %arg5[%c0_8, %c0_9] : memref<1x50xf32, #tpu.memory_space<vmem>>, vector<1x50xf32>
    %12 = vector.broadcast %11 : vector<1x50xf32> to vector<16x50xf32>
    %13 = arith.addf %10, %12 : vector<16x50xf32>
    %14 = math.tanh %13 : vector<16x50xf32>
    %c0_10 = arith.constant 0 : index
    %c0_11 = arith.constant 0 : index
    %15 = vector.load %arg6[%c0_10, %c0_11] : memref<16x50xf32, #tpu.memory_space<vmem>>, vector<16x50xf32>
    tpu.vector_store %arg6[%c0_10, %c0_11], %14 {strides = array<i32>} : memref<16x50xf32, #tpu.memory_space<vmem>>, vector<16x50xf32>,
    return
  }
  func.func @transform_0(%arg0: i32) -> (i32, i32) {
    %c0_i32 = arith.constant 0 : i32
    %c0_i32_0 = arith.constant 0 : i32
    return %arg0, %c0_i32 : i32, i32
  }
  func.func @transform_1(%arg0: i32) -> (i32, i32) {
    %c0_i32 = arith.constant 0 : i32
    %c0_i32_0 = arith.constant 0 : i32
    %c0_i32_1 = arith.constant 0 : i32
    return %c0_i32, %c0_i32_0 : i32, i32
  }
  func.func @transform_2(%arg0: i32) -> (i32, i32) {
    %c0_i32 = arith.constant 0 : i32
    %c0_i32_0 = arith.constant 0 : i32
    %c0_i32_1 = arith.constant 0 : i32
    return %c0_i32, %c0_i32_0 : i32, i32
  }
  func.func @transform_3(%arg0: i32) -> (i32, i32) {
    %c0_i32 = arith.constant 0 : i32
    %c0_i32_0 = arith.constant 0 : i32
    %c0_i32_1 = arith.constant 0 : i32
    return %c0_i32, %c0_i32_0 : i32, i32
  }
  func.func @transform_4(%arg0: i32) -> (i32, i32) {
    %c0_i32 = arith.constant 0 : i32
    %c0_i32_0 = arith.constant 0 : i32
    %c0_i32_1 = arith.constant 0 : i32
    return %c0_i32, %c0_i32_0 : i32, i32
  }
  func.func @transform_5(%arg0: i32) -> (i32, i32) {
    %c0_i32 = arith.constant 0 : i32
    %c0_i32_0 = arith.constant 0 : i32
    return %arg0, %c0_i32 : i32, i32
  }
}

</mosaic_0001>

<llo_original>
// kernel: _ae_encoder_call.1
$region0: #{_ae_encoder_call.1}
  #allocation0 [shape = 'u32[]', space=smem, size = 0x4, offset = 0x4, fixed_abs, tag = 'smem constant byte address 0x4 - core index']
  #allocation1 [shape = 'u32[144,128]{1,0:T(1,128)}', space=vmem, size = 0x12000, scoped, tag = 'internal scratch']
  %s0 = inlined_call_operand.vmem [shape: f32[16,64], index: 0, kind: input, shape index: {}]
  %s1 = inlined_call_operand.vmem [shape: bf16[64,512], index: 1, kind: input, shape index: {}]
  %s2 = inlined_call_operand.vmem [shape: f32[1,512], index: 2, kind: input, shape index: {}]
  %s3 = inlined_call_operand.vmem [shape: bf16[512,50], index: 3, kind: input, shape index: {}]
  %s4 = inlined_call_operand.vmem [shape: f32[1,50], index: 4, kind: input, shape index: {}]
  %s5 = inlined_call_operand.hbm [shape: f32[16,50], index: 5, kind: output, shape index: {}]
  %s6 = sld [smem:[#allocation0]]
  $region30: #{_ae_encoder_call.1} parent=0
    _
  %s8 = ssub.s32 1, %s6
  %s9 = scalar_select 0, %s8, %s6
  $region1: #{_ae_encoder_call.1} parent=0
    #allocation2 [shape = 'u8[8192]{0}', space=vmem, size = 0x2000, scoped, tag = 'output window, operand 0, single buffered']
    #allocation3 [shape = 's32[1]{0}', space=sflag, size = 0x4, scoped, tag = 'scoped memory for _ae_encoder_call.1']
    %10 = vsyncpa [#allocation3], 0
    // Predicated region
    $region2: #{_ae_encoder_call.1} parent=1 // pred_check
      _
    $region3: #{_ae_encoder_call.1} parent=1 // pred_check_branch
      %12 = sbr.rel (0) target = $region5
    $region4: #{_ae_encoder_call.1} parent=1 // pred_region
      _
    $region5: #{_ae_encoder_call.1} parent=1 // pred_fallthru
      _
    // Predicated region
    $region6: #{_ae_encoder_call.1} parent=1 // pred_check
      _
    $region7: #{_ae_encoder_call.1} parent=1 // pred_check_branch
      %14 = sbr.rel (0) target = $region9
    $region8: #{_ae_encoder_call.1} parent=1 // pred_region
      _
    $region9: #{_ae_encoder_call.1} parent=1 // pred_fallthru
      _
    // Predicated region
    $region10: #{_ae_encoder_call.1} parent=1 // pred_check
      _
    $region11: #{_ae_encoder_call.1} parent=1 // pred_check_branch
      %16 = sbr.rel (0) target = $region13
    $region12: #{_ae_encoder_call.1} parent=1 // pred_region
      _
    $region13: #{_ae_encoder_call.1} parent=1 // pred_fallthru
      _
    // Predicated region
    $region14: #{_ae_encoder_call.1} parent=1 // pred_check
      _
    $region15: #{_ae_encoder_call.1} parent=1 // pred_check_branch
      %18 = sbr.rel (0) target = $region17
    $region16: #{_ae_encoder_call.1} parent=1 // pred_region
      _
    $region17: #{_ae_encoder_call.1} parent=1 // pred_fallthru
      _
    // Predicated region
    $region18: #{_ae_encoder_call.1} parent=1 // pred_check
      _
    $region19: #{_ae_encoder_call.1} parent=1 // pred_check_branch
      %20 = sbr.rel (0) target = $region21
    $region20: #{_ae_encoder_call.1} parent=1 // pred_region
      _
    $region21: #{_ae_encoder_call.1} parent=1 // pred_fallthru
      _
    %v22 = vld [vmem:[%s0] sm:$0xff]
    %v23 = vld [vmem:[%s0 + $0x8] sm:$0xff]
    %v24 = vpack.c.bf16 %v23, %v22
    %v25 = vld [vmem:[%s1] sm:$0xff]
    %v26 = vld [vmem:[%s1 + $0x8] sm:$0xff]
    %v27 = vld [vmem:[%s1 + $0x10] sm:$0xff]
    %v28 = vld [vmem:[%s1 + $0x18] sm:$0xff]
    %v29 = vld [vmem:[%s1 + $0x20] sm:$0xff]
    %v30 = vld [vmem:[%s1 + $0x28] sm:$0xff]
    %v31 = vld [vmem:[%s1 + $0x30] sm:$0xff]
    %v32 = vld [vmem:[%s1 + $0x38] sm:$0xff]
    %v33 = vld [vmem:[%s1 + $0x40] sm:$0xff]
    %v34 = vld [vmem:[%s1 + $0x48] sm:$0xff]
    %v35 = vld [vmem:[%s1 + $0x50] sm:$0xff]
    %v36 = vld [vmem:[%s1 + $0x58] sm:$0xff]
    %v37 = vld [vmem:[%s1 + $0x60] sm:$0xff]
    %v38 = vld [vmem:[%s1 + $0x68] sm:$0xff]
    %v39 = vld [vmem:[%s1 + $0x70] sm:$0xff]
    %v40 = vld [vmem:[%s1 + $0x78] sm:$0xff]
    %v41 = vld [vmem:[%s2] sm:$0xf]
    %v43 = vlaneseq
    %v44 = vshrl.u32 %v43, 7
    %v45 = vsub.s32 0, %v44
    %v46 = vrot.slane %v41, %v45
    %v47 = vlaneseq
    %v48 = vshrl.u32 %v47, 7
    %v49 = vsub.s32 1, %v48
    %v50 = vrot.slane %v41, %v49
    %v51 = vlaneseq
    %v52 = vshrl.u32 %v51, 7
    %v53 = vsub.s32 2, %v52
    %v54 = vrot.slane %v41, %v53
    %v55 = vlaneseq
    %v56 = vshrl.u32 %v55, 7
    %v57 = vsub.s32 3, %v56
    %v58 = vrot.slane %v41, %v57
    %v79 = vunpack.c.l.b16 %v25
    %v80 = vunpack.c.h.b16 %v25
    %v81 = vunpack.c.l.b16 %v26
    %v82 = vunpack.c.h.b16 %v26
    %v83 = vunpack.c.l.b16 %v27
    %v84 = vunpack.c.h.b16 %v27
    %v85 = vunpack.c.l.b16 %v28
    %v86 = vunpack.c.h.b16 %v28
    %v87 = vunpack.c.l.b16 %v29
    %v88 = vunpack.c.h.b16 %v29
    %v89 = vunpack.c.l.b16 %v30
    %v90 = vunpack.c.h.b16 %v30
    %v91 = vunpack.c.l.b16 %v31
    %v92 = vunpack.c.h.b16 %v31
    %v93 = vunpack.c.l.b16 %v32
    %v94 = vunpack.c.h.b16 %v32
    %v95 = vunpack.c.l.b16 %v33
    %v96 = vunpack.c.h.b16 %v33
    %v97 = vunpack.c.l.b16 %v34
    %v98 = vunpack.c.h.b16 %v34
    %v99 = vunpack.c.l.b16 %v35
    %v100 = vunpack.c.h.b16 %v35
    %v101 = vunpack.c.l.b16 %v36
    %v102 = vunpack.c.h.b16 %v36
    %v103 = vunpack.c.l.b16 %v37
    %v104 = vunpack.c.h.b16 %v37
    %v105 = vunpack.c.l.b16 %v38
    %v106 = vunpack.c.h.b16 %v38
    %v107 = vunpack.c.l.b16 %v39
    %v108 = vunpack.c.h.b16 %v39
    %v109 = vunpack.c.l.b16 %v40
    %v110 = vunpack.c.h.b16 %v40
    %v111 = vpack.c.b16 %v83, %v79
    %v112 = vpack.c.b16 %v84, %v80
    %v113 = vpack.c.b16 %v85, %v81
    %v114 = vpack.c.b16 %v86, %v82
    %v115 = vpack.c.b16 %v91, %v87
    %v116 = vpack.c.b16 %v92, %v88
    %v117 = vpack.c.b16 %v93, %v89
    %v118 = vpack.c.b16 %v94, %v90
    %v119 = vpack.c.b16 %v99, %v95
    %v120 = vpack.c.b16 %v100, %v96
    %v121 = vpack.c.b16 %v101, %v97
    %v122 = vpack.c.b16 %v102, %v98
    %v123 = vpack.c.b16 %v107, %v103
    %v124 = vpack.c.b16 %v108, %v104
    %v125 = vpack.c.b16 %v109, %v105
    %v126 = vpack.c.b16 %v110, %v106
    %vm143 = vcmask 523264
    %v145 = vsel %vm143, %v24, 0
    %147 = vmatprep.subr.bf16.mxu0 0
    %148 = vmatpush1.bf16.msra.mxu0 0
    %149 = vmatprep.subr.bf16.mxu0 0
    %150 = vmatpush1.bf16.msra.mxu0 0
    %151 = vmatprep.subr.bf16.mxu0 0
    %152 = vmatpush1.bf16.msra.mxu0 0
    %153 = vmatprep.subr.bf16.mxu0 0
    %154 = vmatpush1.bf16.msra.mxu0 0
    %155 = vmatprep.subr.bf16.mxu0 %v124
    %156 = vmatpush1.bf16.msra.mxu0 %v123
    %157 = vmatprep.subr.bf16.mxu0 %v120
    %158 = vmatpush1.bf16.msra.mxu0 %v119
    %159 = vmatprep.subr.bf16.mxu0 %v116
    %160 = vmatpush1.bf16.msra.mxu0 %v115
    %161 = vmatprep.subr.bf16.mxu0 %v112
    %162 = vmatpush1.bf16.msra.mxu0 %v111
    %163 = vmatprep.subr.bf16.mxu0 0
    %164 = vmatpush2.bf16.msra.mxu0 0
    %165 = vmatprep.subr.bf16.mxu0 0
    %166 = vmatpush2.bf16.msra.mxu0 0
    %167 = vmatprep.subr.bf16.mxu0 0
    %168 = vmatpush2.bf16.msra.mxu0 0
    %169 = vmatprep.subr.bf16.mxu0 0
    %170 = vmatpush2.bf16.msra.mxu0 0
    %171 = vmatprep.subr.bf16.mxu0 0
    %172 = vmatpush2.bf16.msra.mxu0 0
    %173 = vmatprep.subr.bf16.mxu0 0
    %174 = vmatpush2.bf16.msra.mxu0 0
    %175 = vmatprep.subr.bf16.mxu0 0
    %176 = vmatpush2.bf16.msra.mxu0 0
    %177 = vmatprep.subr.bf16.mxu0 0
    %178 = vmatpush2.bf16.msra.mxu0 0
    %179 = vmatprep.mubr.bf16.mxu0 0
    %180 = vmatmul.mubr.bf16.gmra.mxu0 %v145
    %v181 = vpop.f32.mrf.mxu0
    %v182 = vadd.f32 %v46, %v181
    %v183 = vpop.f32.mrf.mxu0
    %v184 = vadd.f32 %v50, %v183
    %v185 = vpop.f32.mrf.mxu0
    %v186 = vadd.f32 %v46, %v185
    %v187 = vpop.f32.mrf.mxu0
    %v188 = vadd.f32 %v50, %v187
    %189 = vdwg.mxu0
    %190 = vmatprep.subr.bf16.mxu0 0
    %191 = vmatpush1.bf16.msra.mxu0 0
    %192 = vmatprep.subr.bf16.mxu0 0
    %193 = vmatpush1.bf16.msra.mxu0 0
    %194 = vmatprep.subr.bf16.mxu0 0
    %195 = vmatpush1.bf16.msra.mxu0 0
    %196 = vmatprep.subr.bf16.mxu0 0
    %197 = vmatpush1.bf16.msra.mxu0 0
    %198 = vmatprep.subr.bf16.mxu0 %v126
    %199 = vmatpush1.bf16.msra.mxu0 %v125
    %200 = vmatprep.subr.bf16.mxu0 %v122
    %201 = vmatpush1.bf16.msra.mxu0 %v121
    %202 = vmatprep.subr.bf16.mxu0 %v118
    %203 = vmatpush1.bf16.msra.mxu0 %v117
    %204 = vmatprep.subr.bf16.mxu0 %v114
    %205 = vmatpush1.bf16.msra.mxu0 %v113
    %206 = vmatprep.subr.bf16.mxu0 0
    %207 = vmatpush2.bf16.msra.mxu0 0
    %208 = vmatprep.subr.bf16.mxu0 0
    %209 = vmatpush2.bf16.msra.mxu0 0
    %210 = vmatprep.subr.bf16.mxu0 0
    %211 = vmatpush2.bf16.msra.mxu0 0
    %212 = vmatprep.subr.bf16.mxu0 0
    %213 = vmatpush2.bf16.msra.mxu0 0
    %214 = vmatprep.subr.bf16.mxu0 0
    %215 = vmatpush2.bf16.msra.mxu0 0
    %216 = vmatprep.subr.bf16.mxu0 0
    %217 = vmatpush2.bf16.msra.mxu0 0
    %218 = vmatprep.subr.bf16.mxu0 0
    %219 = vmatpush2.bf16.msra.mxu0 0
    %220 = vmatprep.subr.bf16.mxu0 0
    %221 = vmatpush2.bf16.msra.mxu0 0
    %222 = vmatprep.mubr.bf16.mxu0 0
    %223 = vmatmul.mubr.bf16.gmra.mxu0 %v145
    %v224 = vpop.f32.mrf.mxu0
    %v225 = vadd.f32 %v54, %v224
    %v226 = vpop.f32.mrf.mxu0
    %v227 = vadd.f32 %v58, %v226
    %v228 = vpop.f32.mrf.mxu0
    %v229 = vadd.f32 %v54, %v228
    %v230 = vpop.f32.mrf.mxu0
    %v231 = vadd.f32 %v58, %v230
    %232 = vdwg.mxu0
    %v233 = vpack.c.bf16 %v186, %v182
    %v234 = vpack.c.bf16 %v188, %v184
    %v235 = vpack.c.bf16 %v229, %v225
    %v236 = vpack.c.bf16 %v231, %v227
    %v237 = vtanh.bf16.pop %v233
    %v238 = vtanh.bf16.pop %v234
    %v239 = vtanh.bf16.pop %v235
    %v240 = vtanh.bf16.pop %v236
    %v241 = vld [vmem:[%s3] sm:$0xf]
    %v242 = vld [vmem:[%s3 + $0x4] sm:$0xf]
    %v243 = vld [vmem:[%s3 + $0x8] sm:$0xf]
    %v244 = vld [vmem:[%s3 + $0xc] sm:$0xf]
    %v245 = vld [vmem:[%s3 + $0x10] sm:$0xf]
    %v246 = vld [vmem:[%s3 + $0x14] sm:$0xf]
    %v247 = vld [vmem:[%s3 + $0x18] sm:$0xf]
    %v248 = vld [vmem:[%s3 + $0x1c] sm:$0xf]
    %v249 = vld [vmem:[%s3 + $0x20] sm:$0xf]
    %v250 = vld [vmem:[%s3 + $0x24] sm:$0xf]
    %v251 = vld [vmem:[%s3 + $0x28] sm:$0xf]
    %v252 = vld [vmem:[%s3 + $0x2c] sm:$0xf]
    %v253 = vld [vmem:[%s3 + $0x30] sm:$0xf]
    %v254 = vld [vmem:[%s3 + $0x34] sm:$0xf]
    %v255 = vld [vmem:[%s3 + $0x38] sm:$0xf]
    %v256 = vld [vmem:[%s3 + $0x3c] sm:$0xf]
    %v257 = vld [vmem:[%s3 + $0x40] sm:$0xf]
    %v258 = vld [vmem:[%s3 + $0x44] sm:$0xf]
    %v259 = vld [vmem:[%s3 + $0x48] sm:$0xf]
    %v260 = vld [vmem:[%s3 + $0x4c] sm:$0xf]
    %v261 = vld [vmem:[%s3 + $0x50] sm:$0xf]
    %v262 = vld [vmem:[%s3 + $0x54] sm:$0xf]
    %v263 = vld [vmem:[%s3 + $0x58] sm:$0xf]
    %v264 = vld [vmem:[%s3 + $0x5c] sm:$0xf]
    %v265 = vld [vmem:[%s3 + $0x60] sm:$0xf]
    %v266 = vld [vmem:[%s3 + $0x64] sm:$0xf]
    %v267 = vld [vmem:[%s3 + $0x68] sm:$0xf]
    %v268 = vld [vmem:[%s3 + $0x6c] sm:$0xf]
    %v269 = vld [vmem:[%s3 + $0x70] sm:$0xf]
    %v270 = vld [vmem:[%s3 + $0x74] sm:$0xf]
    %v271 = vld [vmem:[%s3 + $0x78] sm:$0xf]
    %v272 = vld [vmem:[%s3 + $0x7c] sm:$0xf]
    %v273 = vld [vmem:[%s3 + $0x80] sm:$0xf]
    %v274 = vld [vmem:[%s3 + $0x84] sm:$0xf]
    %v275 = vld [vmem:[%s3 + $0x88] sm:$0xf]
    %v276 = vld [vmem:[%s3 + $0x8c] sm:$0xf]
    %v277 = vld [vmem:[%s3 + $0x90] sm:$0xf]
    %v278 = vld [vmem:[%s3 + $0x94] sm:$0xf]
    %v279 = vld [vmem:[%s3 + $0x98] sm:$0xf]
    %v280 = vld [vmem:[%s3 + $0x9c] sm:$0xf]
    %v281 = vld [vmem:[%s3 + $0xa0] sm:$0xf]
    %v282 = vld [vmem:[%s3 + $0xa4] sm:$0xf]
    %v283 = vld [vmem:[%s3 + $0xa8] sm:$0xf]
    %v284 = vld [vmem:[%s3 + $0xac] sm:$0xf]
    %v285 = vld [vmem:[%s3 + $0xb0] sm:$0xf]
    %v286 = vld [vmem:[%s3 + $0xb4] sm:$0xf]
    %v287 = vld [vmem:[%s3 + $0xb8] sm:$0xf]
    %v288 = vld [vmem:[%s3 + $0xbc] sm:$0xf]
    %v289 = vld [vmem:[%s3 + $0xc0] sm:$0xf]
    %v290 = vld [vmem:[%s3 + $0xc4] sm:$0xf]
    %v291 = vld [vmem:[%s3 + $0xc8] sm:$0xf]
    %v292 = vld [vmem:[%s3 + $0xcc] sm:$0xf]
    %v293 = vld [vmem:[%s3 + $0xd0] sm:$0xf]
    %v294 = vld [vmem:[%s3 + $0xd4] sm:$0xf]
    %v295 = vld [vmem:[%s3 + $0xd8] sm:$0xf]
    %v296 = vld [vmem:[%s3 + $0xdc] sm:$0xf]
    %v297 = vld [vmem:[%s3 + $0xe0] sm:$0xf]
    %v298 = vld [vmem:[%s3 + $0xe4] sm:$0xf]
    %v299 = vld [vmem:[%s3 + $0xe8] sm:$0xf]
    %v300 = vld [vmem:[%s3 + $0xec] sm:$0xf]
    %v301 = vld [vmem:[%s3 + $0xf0] sm:$0xf]
    %v302 = vld [vmem:[%s3 + $0xf4] sm:$0xf]
    %v303 = vld [vmem:[%s3 + $0xf8] sm:$0xf]
    %v304 = vld [vmem:[%s3 + $0xfc] sm:$0xf]
    %v305 = vld [vmem:[%s4] sm:$0x1]
    %v307 = vlaneseq
    %v308 = vshrl.u32 %v307, 7
    %v309 = vsub.s32 0, %v308
    %v310 = vrot.slane %v305, %v309
    %v376 = vunpack.c.l.b16 %v241
    %v377 = vunpack.c.l.b16 %v242
    %v378 = vunpack.c.l.b16 %v243
    %v379 = vunpack.c.l.b16 %v244
    %v380 = vunpack.c.l.b16 %v245
    %v381 = vunpack.c.l.b16 %v246
    %v382 = vunpack.c.l.b16 %v247
    %v383 = vunpack.c.l.b16 %v248
    %v384 = vunpack.c.l.b16 %v249
    %v385 = vunpack.c.l.b16 %v250
    %v386 = vunpack.c.l.b16 %v251
    %v387 = vunpack.c.l.b16 %v252
    %v388 = vunpack.c.l.b16 %v253
    %v389 = vunpack.c.l.b16 %v254
    %v390 = vunpack.c.l.b16 %v255
    %v391 = vunpack.c.l.b16 %v256
    %v392 = vunpack.c.l.b16 %v257
    %v393 = vunpack.c.l.b16 %v258
    %v394 = vunpack.c.l.b16 %v259
    %v395 = vunpack.c.l.b16 %v260
    %v396 = vunpack.c.l.b16 %v261
    %v397 = vunpack.c.l.b16 %v262
    %v398 = vunpack.c.l.b16 %v263
    %v399 = vunpack.c.l.b16 %v264
    %v400 = vunpack.c.l.b16 %v265
    %v401 = vunpack.c.l.b16 %v266
    %v402 = vunpack.c.l.b16 %v267
    %v403 = vunpack.c.l.b16 %v268
    %v404 = vunpack.c.l.b16 %v269
    %v405 = vunpack.c.l.b16 %v270
    %v406 = vunpack.c.l.b16 %v271
    %v407 = vunpack.c.l.b16 %v272
    %v408 = vunpack.c.l.b16 %v273
    %v409 = vunpack.c.l.b16 %v274
    %v410 = vunpack.c.l.b16 %v275
    %v411 = vunpack.c.l.b16 %v276
    %v412 = vunpack.c.l.b16 %v277
    %v413 = vunpack.c.l.b16 %v278
    %v414 = vunpack.c.l.b16 %v279
    %v415 = vunpack.c.l.b16 %v280
    %v416 = vunpack.c.l.b16 %v281
    %v417 = vunpack.c.l.b16 %v282
    %v418 = vunpack.c.l.b16 %v283
    %v419 = vunpack.c.l.b16 %v284
    %v420 = vunpack.c.l.b16 %v285
    %v421 = vunpack.c.l.b16 %v286
    %v422 = vunpack.c.l.b16 %v287
    %v423 = vunpack.c.l.b16 %v288
    %v424 = vunpack.c.l.b16 %v289
    %v425 = vunpack.c.l.b16 %v290
    %v426 = vunpack.c.l.b16 %v291
    %v427 = vunpack.c.l.b16 %v292
    %v428 = vunpack.c.l.b16 %v293
    %v429 = vunpack.c.l.b16 %v294
    %v430 = vunpack.c.l.b16 %v295
    %v431 = vunpack.c.l.b16 %v296
    %v432 = vunpack.c.l.b16 %v297
    %v433 = vunpack.c.l.b16 %v298
    %v434 = vunpack.c.l.b16 %v299
    %v435 = vunpack.c.l.b16 %v300
    %v436 = vunpack.c.l.b16 %v301
    %v437 = vunpack.c.l.b16 %v302
    %v438 = vunpack.c.l.b16 %v303
    %v439 = vunpack.c.l.b16 %v304
    %v440 = vpack.c.b16 %v377, %v376
    %v441 = vpack.c.b16 %v379, %v378
    %v442 = vpack.c.b16 %v381, %v380
    %v443 = vpack.c.b16 %v383, %v382
    %v444 = vpack.c.b16 %v385, %v384
    %v445 = vpack.c.b16 %v387, %v386
    %v446 = vpack.c.b16 %v389, %v388
    %v447 = vpack.c.b16 %v391, %v390
    %v448 = vpack.c.b16 %v393, %v392
    %v449 = vpack.c.b16 %v395, %v394
    %v450 = vpack.c.b16 %v397, %v396
    %v451 = vpack.c.b16 %v399, %v398
    %v452 = vpack.c.b16 %v401, %v400
    %v453 = vpack.c.b16 %v403, %v402
    %v454 = vpack.c.b16 %v405, %v404
    %v455 = vpack.c.b16 %v407, %v406
    %v456 = vpack.c.b16 %v409, %v408
    %v457 = vpack.c.b16 %v411, %v410
    %v458 = vpack.c.b16 %v413, %v412
    %v459 = vpack.c.b16 %v415, %v414
    %v460 = vpack.c.b16 %v417, %v416
    %v461 = vpack.c.b16 %v419, %v418
    %v462 = vpack.c.b16 %v421, %v420
    %v463 = vpack.c.b16 %v423, %v422
    %v464 = vpack.c.b16 %v425, %v424
    %v465 = vpack.c.b16 %v427, %v426
    %v466 = vpack.c.b16 %v429, %v428
    %v467 = vpack.c.b16 %v431, %v430
    %v468 = vpack.c.b16 %v433, %v432
    %v469 = vpack.c.b16 %v435, %v434
    %v470 = vpack.c.b16 %v437, %v436
    %v471 = vpack.c.b16 %v439, %v438
    %504 = vmatprep.subr.bf16.mxu0 0
    %505 = vmatpush1.bf16.msra.mxu0 %v447
    %506 = vmatprep.subr.bf16.mxu0 0
    %507 = vmatpush1.bf16.msra.mxu0 %v446
    %508 = vmatprep.subr.bf16.mxu0 0
    %509 = vmatpush1.bf16.msra.mxu0 %v445
    %510 = vmatprep.subr.bf16.mxu0 0
    %511 = vmatpush1.bf16.msra.mxu0 %v444
    %512 = vmatprep.subr.bf16.mxu0 0
    %513 = vmatpush1.bf16.msra.mxu0 %v443
    %514 = vmatprep.subr.bf16.mxu0 0
    %515 = vmatpush1.bf16.msra.mxu0 %v442
    %516 = vmatprep.subr.bf16.mxu0 0
    %517 = vmatpush1.bf16.msra.mxu0 %v441
    %518 = vmatprep.subr.bf16.mxu0 0
    %519 = vmatpush1.bf16.msra.mxu0 %v440
    %520 = vmatprep.subr.bf16.mxu0 0
    %521 = vmatpush2.bf16.msra.mxu0 %v455
    %522 = vmatprep.subr.bf16.mxu0 0
    %523 = vmatpush2.bf16.msra.mxu0 %v454
    %524 = vmatprep.subr.bf16.mxu0 0
    %525 = vmatpush2.bf16.msra.mxu0 %v453
    %526 = vmatprep.subr.bf16.mxu0 0
    %527 = vmatpush2.bf16.msra.mxu0 %v452
    %528 = vmatprep.subr.bf16.mxu0 0
    %529 = vmatpush2.bf16.msra.mxu0 %v451
    %530 = vmatprep.subr.bf16.mxu0 0
    %531 = vmatpush2.bf16.msra.mxu0 %v450
    %532 = vmatprep.subr.bf16.mxu0 0
    %533 = vmatpush2.bf16.msra.mxu0 %v449
    %534 = vmatprep.subr.bf16.mxu0 0
    %535 = vmatpush2.bf16.msra.mxu0 %v448
    %536 = vmatprep.mubr.bf16.mxu0 %v238
    %537 = vmatmul.mubr.bf16.gmra.mxu0 %v237
    %v538 = vpop.f32.mrf.mxu0
    %v539 = vadd.f32 %v310, %v538
    %v540 = vpop.f32.mrf.mxu0
    %v541 = vpop.f32.mrf.mxu0
    %v542 = vadd.f32 %v310, %v541
    %v543 = vpop.f32.mrf.mxu0
    %544 = vdwg.mxu0
    %545 = vmatprep.subr.bf16.mxu0 0
    %546 = vmatpush1.bf16.msra.mxu0 %v463
    %547 = vmatprep.subr.bf16.mxu0 0
    %548 = vmatpush1.bf16.msra.mxu0 %v462
    %549 = vmatprep.subr.bf16.mxu0 0
    %550 = vmatpush1.bf16.msra.mxu0 %v461
    %551 = vmatprep.subr.bf16.mxu0 0
    %552 = vmatpush1.bf16.msra.mxu0 %v460
    %553 = vmatprep.subr.bf16.mxu0 0
    %554 = vmatpush1.bf16.msra.mxu0 %v459
    %555 = vmatprep.subr.bf16.mxu0 0
    %556 = vmatpush1.bf16.msra.mxu0 %v458
    %557 = vmatprep.subr.bf16.mxu0 0
    %558 = vmatpush1.bf16.msra.mxu0 %v457
    %559 = vmatprep.subr.bf16.mxu0 0
    %560 = vmatpush1.bf16.msra.mxu0 %v456
    %561 = vmatprep.subr.bf16.mxu0 0
    %562 = vmatpush2.bf16.msra.mxu0 %v471
    %563 = vmatprep.subr.bf16.mxu0 0
    %564 = vmatpush2.bf16.msra.mxu0 %v470
    %565 = vmatprep.subr.bf16.mxu0 0
    %566 = vmatpush2.bf16.msra.mxu0 %v469
    %567 = vmatprep.subr.bf16.mxu0 0
    %568 = vmatpush2.bf16.msra.mxu0 %v468
    %569 = vmatprep.subr.bf16.mxu0 0
    %570 = vmatpush2.bf16.msra.mxu0 %v467
    %571 = vmatprep.subr.bf16.mxu0 0
    %572 = vmatpush2.bf16.msra.mxu0 %v466
    %573 = vmatprep.subr.bf16.mxu0 0
    %574 = vmatpush2.bf16.msra.mxu0 %v465
    %575 = vmatprep.subr.bf16.mxu0 0
    %576 = vmatpush2.bf16.msra.mxu0 %v464
    %577 = vmatprep.mubr.bf16.mxu0 %v240
    %578 = vmatmul.mubr.bf16.gmra.mxu0 %v239
    %v579 = vpop.f32.mrf.mxu0
    %v580 = vadd.f32 %v539, %v579
    %v581 = vpop.f32.mrf.mxu0
    %v582 = vpop.f32.mrf.mxu0
    %v583 = vadd.f32 %v542, %v582
    %v584 = vpop.f32.mrf.mxu0
    %585 = vdwg.mxu0
    %v586 = vtanh.pop %v580
    %v587 = vtanh.pop %v583
    %vm588 = vcmask 408576
    %589 = vst.msk [vmem:[#allocation2] sm:$0xff] %vm588, %v586
    %590 = vst.msk [vmem:[#allocation2 + $0x8] sm:$0xff] %vm588, %v587
    // Predicated region
    $region22: #{_ae_encoder_call.1} parent=1 // pred_check
      _
    $region23: #{_ae_encoder_call.1} parent=1 // pred_check_branch
      %592 = sbr.rel (0) target = $region25
    $region24: #{_ae_encoder_call.1} parent=1 // pred_region
      %s594 = ssub.s32 256, 256
      %595 = vsyncadd [#allocation3], %s594
      %s596 = sshll.u32 [#allocation2], 4
      %s597 = int_to_ptr.vmem [resolvable:$true] %s596
      %602 = dma.vmem_to_hbm [thread:$0]  %s597, 256, %s5, [#allocation3], 128, 128, 8
    $region25: #{_ae_encoder_call.1} parent=1 // pred_fallthru
      _
    // Predicated region
    $region26: #{_ae_encoder_call.1} parent=1 // pred_check
      _
    $region27: #{_ae_encoder_call.1} parent=1 // pred_check_branch
      %604 = sbr.rel (0) target = $region29
    $region28: #{_ae_encoder_call.1} parent=1 // pred_region
      %605 = dma.done [#allocation3], 256
    $region29: #{_ae_encoder_call.1} parent=1 // pred_fallthru
      _
    %606 = vsyncpa [#allocation3], 1

// kernel: _ae_encoder_call.1
$region0: #{_ae_encoder_call.1}
  #allocation0 [shape = 'u32[]', space=smem, size = 0x4, offset = 0x4, fixed_abs, tag = 'smem constant byte address 0x4 - core index']
  #allocation1 [shape = 'u32[144,128]{1,0:T(1,128)}', space=vmem, size = 0x12000, scoped, tag = 'internal scratch']
  %s0 = inlined_call_operand.vmem [shape: f32[16,64], index: 0, kind: input, shape index: {}]
  %s1 = inlined_call_operand.vmem [shape: bf16[64,512], index: 1, kind: input, shape index: {}]
  %s2 = inlined_call_operand.vmem [shape: f32[1,512], index: 2, kind: input, shape index: {}]
  %s3 = inlined_call_operand.vmem [shape: bf16[512,50], index: 3, kind: input, shape index: {}]
  %s4 = inlined_call_operand.vmem [shape: f32[1,50], index: 4, kind: input, shape index: {}]
  %s5 = inlined_call_operand.hbm [shape: f32[16,50], index: 5, kind: output, shape index: {}]
  %s6 = sld [smem:[#allocation0]]
  $region30: #{_ae_encoder_call.1} parent=0
    _
  %s8 = ssub.s32 1, %s6
  %s9 = scalar_select 0, %s8, %s6
  $region1: #{_ae_encoder_call.1} parent=0
    #allocation2 [shape = 'u8[8192]{0}', space=vmem, size = 0x2000, scoped, tag = 'output window, operand 0, single buffered']
    #allocation3 [shape = 's32[1]{0}', space=sflag, size = 0x4, scoped, tag = 'scoped memory for _ae_encoder_call.1']
    %10 = vsyncpa [#allocation3], 0
    // Predicated region
    $region2: #{_ae_encoder_call.1} parent=1 // pred_check
      _
    $region3: #{_ae_encoder_call.1} parent=1 // pred_check_branch
      %12 = sbr.rel (0) target = $region5
    $region4: #{_ae_encoder_call.1} parent=1 // pred_region
      _
    $region5: #{_ae_encoder_call.1} parent=1 // pred_fallthru
      _
    // Predicated region
    $region6: #{_ae_encoder_call.1} parent=1 // pred_check
      _
    $region7: #{_ae_encoder_call.1} parent=1 // pred_check_branch
      %14 = sbr.rel (0) target = $region9
    $region8: #{_ae_encoder_call.1} parent=1 // pred_region
      _
    $region9: #{_ae_encoder_call.1} parent=1 // pred_fallthru
      _
    // Predicated region
    $region10: #{_ae_encoder_call.1} parent=1 // pred_check
      _
    $region11: #{_ae_encoder_call.1} parent=1 // pred_check_branch
      %16 = sbr.rel (0) target = $region13
    $region12: #{_ae_encoder_call.1} parent=1 // pred_region
      _
    $region13: #{_ae_encoder_call.1} parent=1 // pred_fallthru
      _
    // Predicated region
    $region14: #{_ae_encoder_call.1} parent=1 // pred_check
      _
    $region15: #{_ae_encoder_call.1} parent=1 // pred_check_branch
      %18 = sbr.rel (0) target = $region17
    $region16: #{_ae_encoder_call.1} parent=1 // pred_region
      _
    $region17: #{_ae_encoder_call.1} parent=1 // pred_fallthru
      _
    // Predicated region
    $region18: #{_ae_encoder_call.1} parent=1 // pred_check
      _
    $region19: #{_ae_encoder_call.1} parent=1 // pred_check_branch
      %20 = sbr.rel (0) target = $region21
    $region20: #{_ae_encoder_call.1} parent=1 // pred_region
      _
    $region21: #{_ae_encoder_call.1} parent=1 // pred_fallthru
      _
    %v22 = vld [vmem:[%s0] sm:$0xff]
    %v23 = vld [vmem:[%s0 + $0x8] sm:$0xff]
    %v24 = vpack.c.bf16 %v23, %v22
    %v25 = vld [vmem:[%s1] sm:$0xff]
    %v26 = vld [vmem:[%s1 + $0x8] sm:$0xff]
    %v27 = vld [vmem:[%s1 + $0x10] sm:$0xff]
    %v28 = vld [vmem:[%s1 + $0x18] sm:$0xff]
    %v29 = vld [vmem:[%s1 + $0x20] sm:$0xff]
    %v30 = vld [vmem:[%s1 + $0x28] sm:$0xff]
    %v31 = vld [vmem:[%s1 + $0x30] sm:$0xff]
    %v32 = vld [vmem:[%s1 + $0x38] sm:$0xff]
    %v33 = vld [vmem:[%s1 + $0x40] sm:$0xff]
    %v34 = vld [vmem:[%s1 + $0x48] sm:$0xff]
    %v35 = vld [vmem:[%s1 + $0x50] sm:$0xff]
    %v36 = vld [vmem:[%s1 + $0x58] sm:$0xff]
    %v37 = vld [vmem:[%s1 + $0x60] sm:$0xff]
    %v38 = vld [vmem:[%s1 + $0x68] sm:$0xff]
    %v39 = vld [vmem:[%s1 + $0x70] sm:$0xff]
    %v40 = vld [vmem:[%s1 + $0x78] sm:$0xff]
    %v41 = vld [vmem:[%s2] sm:$0xf]
    %v43 = vlaneseq
    %v44 = vshrl.u32 %v43, 7
    %v45 = vsub.s32 0, %v44
    %v46 = vrot.slane %v41, %v45
    %v47 = vlaneseq
    %v48 = vshrl.u32 %v47, 7
    %v49 = vsub.s32 1, %v48
    %v50 = vrot.slane %v41, %v49
    %v51 = vlaneseq
    %v52 = vshrl.u32 %v51, 7
    %v53 = vsub.s32 2, %v52
    %v54 = vrot.slane %v41, %v53
    %v55 = vlaneseq
    %v56 = vshrl.u32 %v55, 7
    %v57 = vsub.s32 3, %v56
    %v58 = vrot.slane %v41, %v57
    %v79 = vunpack.c.l.b16 %v25
    %v80 = vunpack.c.h.b16 %v25
    %v81 = vunpack.c.l.b16 %v26
    %v82 = vunpack.c.h.b16 %v26
    %v83 = vunpack.c.l.b16 %v27
    %v84 = vunpack.c.h.b16 %v27
    %v85 = vunpack.c.l.b16 %v28
    %v86 = vunpack.c.h.b16 %v28
    %v87 = vunpack.c.l.b16 %v29
    %v88 = vunpack.c.h.b16 %v29
    %v89 = vunpack.c.l.b16 %v30
    %v90 = vunpack.c.h.b16 %v30
    %v91 = vunpack.c.l.b16 %v31
    %v92 = vunpack.c.h.b16 %v31
    %v93 = vunpack.c.l.b16 %v32
    %v94 = vunpack.c.h.b16 %v32
    %v95 = vunpack.c.l.b16 %v33
    %v96 = vunpack.c.h.b16 %v33
    %v97 = vunpack.c.l.b16 %v34
    %v98 = vunpack.c.h.b16 %v34
    %v99 = vunpack.c.l.b16 %v35
    %v100 = vunpack.c.h.b16 %v35
    %v101 = vunpack.c.l.b16 %v36
    %v102 = vunpack.c.h.b16 %v36
    %v103 = vunpack.c.l.b16 %v37
    %v104 = vunpack.c.h.b16 %v37
    %v105 = vunpack.c.l.b16 %v38
    %v106 = vunpack.c.h.b16 %v38
    %v107 = vunpack.c.l.b16 %v39
    %v108 = vunpack.c.h.b16 %v39
    %v109 = vunpack.c.l.b16 %v40
    %v110 = vunpack.c.h.b16 %v40
    %v111 = vpack.c.b16 %v83, %v79
    %v112 = vpack.c.b16 %v84, %v80
    %v113 = vpack.c.b16 %v85, %v81
    %v114 = vpack.c.b16 %v86, %v82
    %v115 = vpack.c.b16 %v91, %v87
    %v116 = vpack.c.b16 %v92, %v88
    %v117 = vpack.c.b16 %v93, %v89
    %v118 = vpack.c.b16 %v94, %v90
    %v119 = vpack.c.b16 %v99, %v95
    %v120 = vpack.c.b16 %v100, %v96
    %v121 = vpack.c.b16 %v101, %v97
    %v122 = vpack.c.b16 %v102, %v98
    %v123 = vpack.c.b16 %v107, %v103
    %v124 = vpack.c.b16 %v108, %v104
    %v125 = vpack.c.b16 %v109, %v105
    %v126 = vpack.c.b16 %v110, %v106
    %vm143 = vcmask 523264
    %v145 = vsel %vm143, %v24, 0
    %147 = vmatprep.subr.bf16.mxu0 0
    %148 = vmatpush1.bf16.msra.mxu0 0
    %149 = vmatprep.subr.bf16.mxu0 0
    %150 = vmatpush1.bf16.msra.mxu0 0
    %151 = vmatprep.subr.bf16.mxu0 0
    %152 = vmatpush1.bf16.msra.mxu0 0
    %153 = vmatprep.subr.bf16.mxu0 0
    %154 = vmatpush1.bf16.msra.mxu0 0
    %155 = vmatprep.subr.bf16.mxu0 %v124
    %156 = vmatpush1.bf16.msra.mxu0 %v123
    %157 = vmatprep.subr.bf16.mxu0 %v120
    %158 = vmatpush1.bf16.msra.mxu0 %v119
    %159 = vmatprep.subr.bf16.mxu0 %v116
    %160 = vmatpush1.bf16.msra.mxu0 %v115
    %161 = vmatprep.subr.bf16.mxu0 %v112
    %162 = vmatpush1.bf16.msra.mxu0 %v111
    %163 = vmatprep.subr.bf16.mxu0 0
    %164 = vmatpush2.bf16.msra.mxu0 0
    %165 = vmatprep.subr.bf16.mxu0 0
    %166 = vmatpush2.bf16.msra.mxu0 0
    %167 = vmatprep.subr.bf16.mxu0 0
    %168 = vmatpush2.bf16.msra.mxu0 0
    %169 = vmatprep.subr.bf16.mxu0 0
    %170 = vmatpush2.bf16.msra.mxu0 0
    %171 = vmatprep.subr.bf16.mxu0 0
    %172 = vmatpush2.bf16.msra.mxu0 0
    %173 = vmatprep.subr.bf16.mxu0 0
    %174 = vmatpush2.bf16.msra.mxu0 0
    %175 = vmatprep.subr.bf16.mxu0 0
    %176 = vmatpush2.bf16.msra.mxu0 0
    %177 = vmatprep.subr.bf16.mxu0 0
    %178 = vmatpush2.bf16.msra.mxu0 0
    %179 = vmatprep.mubr.bf16.mxu0 0
    %180 = vmatmul.mubr.bf16.gmra.mxu0 %v145
    %v181 = vpop.f32.mrf.mxu0
    %v182 = vadd.f32 %v46, %v181
    %v183 = vpop.f32.mrf.mxu0
    %v184 = vadd.f32 %v50, %v183
    %v185 = vpop.f32.mrf.mxu0
    %v186 = vadd.f32 %v46, %v185
    %v187 = vpop.f32.mrf.mxu0
    %v188 = vadd.f32 %v50, %v187
    %189 = vdwg.mxu0
    %190 = vmatprep.subr.bf16.mxu0 0
    %191 = vmatpush1.bf16.msra.mxu0 0
    %192 = vmatprep.subr.bf16.mxu0 0
    %193 = vmatpush1.bf16.msra.mxu0 0
    %194 = vmatprep.subr.bf16.mxu0 0
    %195 = vmatpush1.bf16.msra.mxu0 0
    %196 = vmatprep.subr.bf16.mxu0 0
    %197 = vmatpush1.bf16.msra.mxu0 0
    %198 = vmatprep.subr.bf16.mxu0 %v126
    %199 = vmatpush1.bf16.msra.mxu0 %v125
    %200 = vmatprep.subr.bf16.mxu0 %v122
    %201 = vmatpush1.bf16.msra.mxu0 %v121
    %202 = vmatprep.subr.bf16.mxu0 %v118
    %203 = vmatpush1.bf16.msra.mxu0 %v117
    %204 = vmatprep.subr.bf16.mxu0 %v114
    %205 = vmatpush1.bf16.msra.mxu0 %v113
    %206 = vmatprep.subr.bf16.mxu0 0
    %207 = vmatpush2.bf16.msra.mxu0 0
    %208 = vmatprep.subr.bf16.mxu0 0
    %209 = vmatpush2.bf16.msra.mxu0 0
    %210 = vmatprep.subr.bf16.mxu0 0
    %211 = vmatpush2.bf16.msra.mxu0 0
    %212 = vmatprep.subr.bf16.mxu0 0
    %213 = vmatpush2.bf16.msra.mxu0 0
    %214 = vmatprep.subr.bf16.mxu0 0
    %215 = vmatpush2.bf16.msra.mxu0 0
    %216 = vmatprep.subr.bf16.mxu0 0
    %217 = vmatpush2.bf16.msra.mxu0 0
    %218 = vmatprep.subr.bf16.mxu0 0
    %219 = vmatpush2.bf16.msra.mxu0 0
    %220 = vmatprep.subr.bf16.mxu0 0
    %221 = vmatpush2.bf16.msra.mxu0 0
    %222 = vmatprep.mubr.bf16.mxu0 0
    %223 = vmatmul.mubr.bf16.gmra.mxu0 %v145
    %v224 = vpop.f32.mrf.mxu0
    %v225 = vadd.f32 %v54, %v224
    %v226 = vpop.f32.mrf.mxu0
    %v227 = vadd.f32 %v58, %v226
    %v228 = vpop.f32.mrf.mxu0
    %v229 = vadd.f32 %v54, %v228
    %v230 = vpop.f32.mrf.mxu0
    %v231 = vadd.f32 %v58, %v230
    %232 = vdwg.mxu0
    %v233 = vpack.c.bf16 %v186, %v182
    %v234 = vpack.c.bf16 %v188, %v184
    %v235 = vpack.c.bf16 %v229, %v225
    %v236 = vpack.c.bf16 %v231, %v227
    %v237 = vtanh.bf16.pop %v233
    %v238 = vtanh.bf16.pop %v234
    %v239 = vtanh.bf16.pop %v235
    %v240 = vtanh.bf16.pop %v236
    %v241 = vld [vmem:[%s3] sm:$0xf]
    %v242 = vld [vmem:[%s3 + $0x4] sm:$0xf]
    %v243 = vld [vmem:[%s3 + $0x8] sm:$0xf]
    %v244 = vld [vmem:[%s3 + $0xc] sm:$0xf]
    %v245 = vld [vmem:[%s3 + $0x10] sm:$0xf]
    %v246 = vld [vmem:[%s3 + $0x14] sm:$0xf]
    %v247 = vld [vmem:[%s3 + $0x18] sm:$0xf]
    %v248 = vld [vmem:[%s3 + $0x1c] sm:$0xf]
    %v249 = vld [vmem:[%s3 + $0x20] sm:$0xf]
    %v250 = vld [vmem:[%s3 + $0x24] sm:$0xf]
    %v251 = vld [vmem:[%s3 + $0x28] sm:$0xf]
    %v252 = vld [vmem:[%s3 + $0x2c] sm:$0xf]
    %v253 = vld [vmem:[%s3 + $0x30] sm:$0xf]
    %v254 = vld [vmem:[%s3 + $0x34] sm:$0xf]
    %v255 = vld [vmem:[%s3 + $0x38] sm:$0xf]
    %v256 = vld [vmem:[%s3 + $0x3c] sm:$0xf]
    %v257 = vld [vmem:[%s3 + $0x40] sm:$0xf]
    %v258 = vld [vmem:[%s3 + $0x44] sm:$0xf]
    %v259 = vld [vmem:[%s3 + $0x48] sm:$0xf]
    %v260 = vld [vmem:[%s3 + $0x4c] sm:$0xf]
    %v261 = vld [vmem:[%s3 + $0x50] sm:$0xf]
    %v262 = vld [vmem:[%s3 + $0x54] sm:$0xf]
    %v263 = vld [vmem:[%s3 + $0x58] sm:$0xf]
    %v264 = vld [vmem:[%s3 + $0x5c] sm:$0xf]
    %v265 = vld [vmem:[%s3 + $0x60] sm:$0xf]
    %v266 = vld [vmem:[%s3 + $0x64] sm:$0xf]
    %v267 = vld [vmem:[%s3 + $0x68] sm:$0xf]
    %v268 = vld [vmem:[%s3 + $0x6c] sm:$0xf]
    %v269 = vld [vmem:[%s3 + $0x70] sm:$0xf]
    %v270 = vld [vmem:[%s3 + $0x74] sm:$0xf]
    %v271 = vld [vmem:[%s3 + $0x78] sm:$0xf]
    %v272 = vld [vmem:[%s3 + $0x7c] sm:$0xf]
    %v273 = vld [vmem:[%s3 + $0x80] sm:$0xf]
    %v274 = vld [vmem:[%s3 + $0x84] sm:$0xf]
    %v275 = vld [vmem:[%s3 + $0x88] sm:$0xf]
    %v276 = vld [vmem:[%s3 + $0x8c] sm:$0xf]
    %v277 = vld [vmem:[%s3 + $0x90] sm:$0xf]
    %v278 = vld [vmem:[%s3 + $0x94] sm:$0xf]
    %v279 = vld [vmem:[%s3 + $0x98] sm:$0xf]
    %v280 = vld [vmem:[%s3 + $0x9c] sm:$0xf]
    %v281 = vld [vmem:[%s3 + $0xa0] sm:$0xf]
    %v282 = vld [vmem:[%s3 + $0xa4] sm:$0xf]
    %v283 = vld [vmem:[%s3 + $0xa8] sm:$0xf]
    %v284 = vld [vmem:[%s3 + $0xac] sm:$0xf]
    %v285 = vld [vmem:[%s3 + $0xb0] sm:$0xf]
    %v286 = vld [vmem:[%s3 + $0xb4] sm:$0xf]
    %v287 = vld [vmem:[%s3 + $0xb8] sm:$0xf]
    %v288 = vld [vmem:[%s3 + $0xbc] sm:$0xf]
    %v289 = vld [vmem:[%s3 + $0xc0] sm:$0xf]
    %v290 = vld [vmem:[%s3 + $0xc4] sm:$0xf]
    %v291 = vld [vmem:[%s3 + $0xc8] sm:$0xf]
    %v292 = vld [vmem:[%s3 + $0xcc] sm:$0xf]
    %v293 = vld [vmem:[%s3 + $0xd0] sm:$0xf]
    %v294 = vld [vmem:[%s3 + $0xd4] sm:$0xf]
    %v295 = vld [vmem:[%s3 + $0xd8] sm:$0xf]
    %v296 = vld [vmem:[%s3 + $0xdc] sm:$0xf]
    %v297 = vld [vmem:[%s3 + $0xe0] sm:$0xf]
    %v298 = vld [vmem:[%s3 + $0xe4] sm:$0xf]
    %v299 = vld [vmem:[%s3 + $0xe8] sm:$0xf]
    %v300 = vld [vmem:[%s3 + $0xec] sm:$0xf]
    %v301 = vld [vmem:[%s3 + $0xf0] sm:$0xf]
    %v302 = vld [vmem:[%s3 + $0xf4] sm:$0xf]
    %v303 = vld [vmem:[%s3 + $0xf8] sm:$0xf]
    %v304 = vld [vmem:[%s3 + $0xfc] sm:$0xf]
    %v305 = vld [vmem:[%s4] sm:$0x1]
    %v307 = vlaneseq
    %v308 = vshrl.u32 %v307, 7
    %v309 = vsub.s32 0, %v308
    %v310 = vrot.slane %v305, %v309
    %v376 = vunpack.c.l.b16 %v241
    %v377 = vunpack.c.l.b16 %v242
    %v378 = vunpack.c.l.b16 %v243
    %v379 = vunpack.c.l.b16 %v244
    %v380 = vunpack.c.l.b16 %v245
    %v381 = vunpack.c.l.b16 %v246
    %v382 = vunpack.c.l.b16 %v247
    %v383 = vunpack.c.l.b16 %v248
    %v384 = vunpack.c.l.b16 %v249
    %v385 = vunpack.c.l.b16 %v250
    %v386 = vunpack.c.l.b16 %v251
    %v387 = vunpack.c.l.b16 %v252
    %v388 = vunpack.c.l.b16 %v253
    %v389 = vunpack.c.l.b16 %v254
    %v390 = vunpack.c.l.b16 %v255
    %v391 = vunpack.c.l.b16 %v256
    %v392 = vunpack.c.l.b16 %v257
    %v393 = vunpack.c.l.b16 %v258
    %v394 = vunpack.c.l.b16 %v259
    %v395 = vunpack.c.l.b16 %v260
    %v396 = vunpack.c.l.b16 %v261
    %v397 = vunpack.c.l.b16 %v262
    %v398 = vunpack.c.l.b16 %v263
    %v399 = vunpack.c.l.b16 %v264
    %v400 = vunpack.c.l.b16 %v265
    %v401 = vunpack.c.l.b16 %v266
    %v402 = vunpack.c.l.b16 %v267
    %v403 = vunpack.c.l.b16 %v268
    %v404 = vunpack.c.l.b16 %v269
    %v405 = vunpack.c.l.b16 %v270
    %v406 = vunpack.c.l.b16 %v271
    %v407 = vunpack.c.l.b16 %v272
    %v408 = vunpack.c.l.b16 %v273
    %v409 = vunpack.c.l.b16 %v274
    %v410 = vunpack.c.l.b16 %v275
    %v411 = vunpack.c.l.b16 %v276
    %v412 = vunpack.c.l.b16 %v277
    %v413 = vunpack.c.l.b16 %v278
    %v414 = vunpack.c.l.b16 %v279
    %v415 = vunpack.c.l.b16 %v280
    %v416 = vunpack.c.l.b16 %v281
    %v417 = vunpack.c.l.b16 %v282
    %v418 = vunpack.c.l.b16 %v283
    %v419 = vunpack.c.l.b16 %v284
    %v420 = vunpack.c.l.b16 %v285
    %v421 = vunpack.c.l.b16 %v286
    %v422 = vunpack.c.l.b16 %v287
    %v423 = vunpack.c.l.b16 %v288
    %v424 = vunpack.c.l.b16 %v289
    %v425 = vunpack.c.l.b16 %v290
    %v426 = vunpack.c.l.b16 %v291
    %v427 = vunpack.c.l.b16 %v292
    %v428 = vunpack.c.l.b16 %v293
    %v429 = vunpack.c.l.b16 %v294
    %v430 = vunpack.c.l.b16 %v295
    %v431 = vunpack.c.l.b16 %v296
    %v432 = vunpack.c.l.b16 %v297
    %v433 = vunpack.c.l.b16 %v298
    %v434 = vunpack.c.l.b16 %v299
    %v435 = vunpack.c.l.b16 %v300
    %v436 = vunpack.c.l.b16 %v301
    %v437 = vunpack.c.l.b16 %v302
    %v438 = vunpack.c.l.b16 %v303
    %v439 = vunpack.c.l.b16 %v304
    %v440 = vpack.c.b16 %v377, %v376
    %v441 = vpack.c.b16 %v379, %v378
    %v442 = vpack.c.b16 %v381, %v380
    %v443 = vpack.c.b16 %v383, %v382
    %v444 = vpack.c.b16 %v385, %v384
    %v445 = vpack.c.b16 %v387, %v386
    %v446 = vpack.c.b16 %v389, %v388
    %v447 = vpack.c.b16 %v391, %v390
    %v448 = vpack.c.b16 %v393, %v392
    %v449 = vpack.c.b16 %v395, %v394
    %v450 = vpack.c.b16 %v397, %v396
    %v451 = vpack.c.b16 %v399, %v398
    %v452 = vpack.c.b16 %v401, %v400
    %v453 = vpack.c.b16 %v403, %v402
    %v454 = vpack.c.b16 %v405, %v404
    %v455 = vpack.c.b16 %v407, %v406
    %v456 = vpack.c.b16 %v409, %v408
    %v457 = vpack.c.b16 %v411, %v410
    %v458 = vpack.c.b16 %v413, %v412
    %v459 = vpack.c.b16 %v415, %v414
    %v460 = vpack.c.b16 %v417, %v416
    %v461 = vpack.c.b16 %v419, %v418
    %v462 = vpack.c.b16 %v421, %v420
    %v463 = vpack.c.b16 %v423, %v422
    %v464 = vpack.c.b16 %v425, %v424
    %v465 = vpack.c.b16 %v427, %v426
    %v466 = vpack.c.b16 %v429, %v428
    %v467 = vpack.c.b16 %v431, %v430
    %v468 = vpack.c.b16 %v433, %v432
    %v469 = vpack.c.b16 %v435, %v434
    %v470 = vpack.c.b16 %v437, %v436
    %v471 = vpack.c.b16 %v439, %v438
    %504 = vmatprep.subr.bf16.mxu0 0
    %505 = vmatpush1.bf16.msra.mxu0 %v447
    %506 = vmatprep.subr.bf16.mxu0 0
    %507 = vmatpush1.bf16.msra.mxu0 %v446
    %508 = vmatprep.subr.bf16.mxu0 0
    %509 = vmatpush1.bf16.msra.mxu0 %v445
    %510 = vmatprep.subr.bf16.mxu0 0
    %511 = vmatpush1.bf16.msra.mxu0 %v444
    %512 = vmatprep.subr.bf16.mxu0 0
    %513 = vmatpush1.bf16.msra.mxu0 %v443
    %514 = vmatprep.subr.bf16.mxu0 0
    %515 = vmatpush1.bf16.msra.mxu0 %v442
    %516 = vmatprep.subr.bf16.mxu0 0
    %517 = vmatpush1.bf16.msra.mxu0 %v441
    %518 = vmatprep.subr.bf16.mxu0 0
    %519 = vmatpush1.bf16.msra.mxu0 %v440
    %520 = vmatprep.subr.bf16.mxu0 0
    %521 = vmatpush2.bf16.msra.mxu0 %v455
    %522 = vmatprep.subr.bf16.mxu0 0
    %523 = vmatpush2.bf16.msra.mxu0 %v454
    %524 = vmatprep.subr.bf16.mxu0 0
    %525 = vmatpush2.bf16.msra.mxu0 %v453
    %526 = vmatprep.subr.bf16.mxu0 0
    %527 = vmatpush2.bf16.msra.mxu0 %v452
    %528 = vmatprep.subr.bf16.mxu0 0
    %529 = vmatpush2.bf16.msra.mxu0 %v451
    %530 = vmatprep.subr.bf16.mxu0 0
    %531 = vmatpush2.bf16.msra.mxu0 %v450
    %532 = vmatprep.subr.bf16.mxu0 0
    %533 = vmatpush2.bf16.msra.mxu0 %v449
    %534 = vmatprep.subr.bf16.mxu0 0
    %535 = vmatpush2.bf16.msra.mxu0 %v448
    %536 = vmatprep.mubr.bf16.mxu0 %v238
    %537 = vmatmul.mubr.bf16.gmra.mxu0 %v237
    %v538 = vpop.f32.mrf.mxu0
    %v539 = vadd.f32 %v310, %v538
    %v540 = vpop.f32.mrf.mxu0
    %v541 = vpop.f32.mrf.mxu0
    %v542 = vadd.f32 %v310, %v541
    %v543 = vpop.f32.mrf.mxu0
    %544 = vdwg.mxu0
    %545 = vmatprep.subr.bf16.mxu0 0
    %546 = vmatpush1.bf16.msra.mxu0 %v463
    %547 = vmatprep.subr.bf16.mxu0 0
    %548 = vmatpush1.bf16.msra.mxu0 %v462
    %549 = vmatprep.subr.bf16.mxu0 0
    %550 = vmatpush1.bf16.msra.mxu0 %v461
    %551 = vmatprep.subr.bf16.mxu0 0
    %552 = vmatpush1.bf16.msra.mxu0 %v460
    %553 = vmatprep.subr.bf16.mxu0 0
    %554 = vmatpush1.bf16.msra.mxu0 %v459
    %555 = vmatprep.subr.bf16.mxu0 0
    %556 = vmatpush1.bf16.msra.mxu0 %v458
    %557 = vmatprep.subr.bf16.mxu0 0
    %558 = vmatpush1.bf16.msra.mxu0 %v457
    %559 = vmatprep.subr.bf16.mxu0 0
    %560 = vmatpush1.bf16.msra.mxu0 %v456
    %561 = vmatprep.subr.bf16.mxu0 0
    %562 = vmatpush2.bf16.msra.mxu0 %v471
    %563 = vmatprep.subr.bf16.mxu0 0
    %564 = vmatpush2.bf16.msra.mxu0 %v470
    %565 = vmatprep.subr.bf16.mxu0 0
    %566 = vmatpush2.bf16.msra.mxu0 %v469
    %567 = vmatprep.subr.bf16.mxu0 0
    %568 = vmatpush2.bf16.msra.mxu0 %v468
    %569 = vmatprep.subr.bf16.mxu0 0
    %570 = vmatpush2.bf16.msra.mxu0 %v467
    %571 = vmatprep.subr.bf16.mxu0 0
    %572 = vmatpush2.bf16.msra.mxu0 %v466
    %573 = vmatprep.subr.bf16.mxu0 0
    %574 = vmatpush2.bf16.msra.mxu0 %v465
    %575 = vmatprep.subr.bf16.mxu0 0
    %576 = vmatpush2.bf16.msra.mxu0 %v464
    %577 = vmatprep.mubr.bf16.mxu0 %v240
    %578 = vmatmul.mubr.bf16.gmra.mxu0 %v239
    %v579 = vpop.f32.mrf.mxu0
    %v580 = vadd.f32 %v539, %v579
    %v581 = vpop.f32.mrf.mxu0
    %v582 = vpop.f32.mrf.mxu0
    %v583 = vadd.f32 %v542, %v582
    %v584 = vpop.f32.mrf.mxu0
    %585 = vdwg.mxu0
    %v586 = vtanh.pop %v580
    %v587 = vtanh.pop %v583
    %vm588 = vcmask 408576
    %589 = vst.msk [vmem:[#allocation2] sm:$0xff] %vm588, %v586
    %590 = vst.msk [vmem:[#allocation2 + $0x8] sm:$0xff] %vm588, %v587
    // Predicated region
    $region22: #{_ae_encoder_call.1} parent=1 // pred_check
      _
    $region23: #{_ae_encoder_call.1} parent=1 // pred_check_branch
      %592 = sbr.rel (0) target = $region25
    $region24: #{_ae_encoder_call.1} parent=1 // pred_region
      %s594 = ssub.s32 256, 256
      %595 = vsyncadd [#allocation3], %s594
      %s596 = sshll.u32 [#allocation2], 4
      %s597 = int_to_ptr.vmem [resolvable:$true] %s596
      %602 = dma.vmem_to_hbm [thread:$0]  %s597, 256, %s5, [#allocation3], 128, 128, 8
    $region25: #{_ae_encoder_call.1} parent=1 // pred_fallthru
      _
    // Predicated region
    $region26: #{_ae_encoder_call.1} parent=1 // pred_check
      _
    $region27: #{_ae_encoder_call.1} parent=1 // pred_check_branch
      %604 = sbr.rel (0) target = $region29
    $region28: #{_ae_encoder_call.1} parent=1 // pred_region
      %605 = dma.done [#allocation3], 256
    $region29: #{_ae_encoder_call.1} parent=1 // pred_fallthru
      _
    %606 = vsyncpa [#allocation3], 1

</llo_original>
